<compile_context>
chip_gen: v5e
topology: v5e:2x2
jax: 0.10.0
libtpu: 0.0.40
codegen_flags: <defaults>
</compile_context>

<pallas_src>
import functools

import jax
import jax.numpy as jnp
from jax.experimental import pallas as pl
from jax.experimental.pallas import tpu as pltpu

NEG_SLOPE = 0.01  # PyTorch nn.LeakyReLU() default


def _residual_block_kernel(x_ref, masks_ref, w1_ref, b1_ref, w2_ref, b2_ref,
                           out_ref, ext_ref, p_ref, *, W):
    # Block shapes:
    #   x_ref, out_ref : (1, C, H*W)     lane-dense activation slabs
    #   masks_ref      : (9, H*W)        0/1 validity mask per 3x3 tap
    #   w*_ref         : (C, 9*C)        im2col-packed weights
    #   b*_ref         : (C, 1)
    #   ext_ref        : (C, H*W + 2G)   slab between zero guard bands, G = W+1
    #   p_ref          : (9*C, H*W)      im2col patch matrix
    C = out_ref.shape[1]
    HW = out_ref.shape[2]
    G = W + 1  # largest |tap offset| = W + 1

    # Guard bands stay zero; interior is rewritten below.  Re-zeroed every grid
    # step (tiny) so the kernel is safe under megacore "parallel" partitioning.
    ext_ref[:, :G] = jnp.zeros((C, G), jnp.float32)
    ext_ref[:, G + HW:] = jnp.zeros((C, G), jnp.float32)

    x = x_ref[0]  # (C, H*W), spatial on lanes

    def im2col(slab):
        # Place the slab between zero guards so each of the 9 taps is a plain
        # lane-offset slice; mask row-wrap / out-of-image pixels (padding=1).
        ext_ref[:, G:G + HW] = slab
        for ky in range(3):
            for kx in range(3):
                t = ky * 3 + kx
                off = (ky - 1) * W + (kx - 1)
                tap = ext_ref[:, G + off:G + off + HW]        # (C, H*W)
                if t != 4:                                    # centre tap: all valid
                    tap = tap * masks_ref[t:t + 1, :]
                p_ref[t * C:(t + 1) * C, :] = tap
        return p_ref[...]                                     # (9C, H*W)

    # ---- conv1 (single K=9C matmul) + bias + LeakyReLU ----
    y1 = jnp.dot(w1_ref[...], im2col(x), preferred_element_type=jnp.float32)
    y1 = y1 + b1_ref[...]
    a1 = jnp.where(y1 > 0, y1, NEG_SLOPE * y1)

    # ---- conv2 + bias ----
    y2 = jnp.dot(w2_ref[...], im2col(a1), preferred_element_type=jnp.float32)
    y2 = y2 + b2_ref[...]

    # ---- residual add ----
    out_ref[0] = (x + y2).astype(out_ref.dtype)


def _build_tap_masks(H, W):
    """(9, H*W) f32; row t = ky*3+kx is 1 where the tap's source pixel lies
    inside the image (implements the conv's zero padding), else 0."""
    hh = jnp.arange(H, dtype=jnp.int32)[:, None]
    ww = jnp.arange(W, dtype=jnp.int32)[None, :]
    rows = []
    for ky in range(3):
        for kx in range(3):
            dy, dx = ky - 1, kx - 1
            ok = ((hh + dy >= 0) & (hh + dy < H) &
                  (ww + dx >= 0) & (ww + dx < W))
            rows.append(ok.reshape(1, H * W))
    return jnp.concatenate(rows, axis=0).astype(jnp.float32)


def _pack_weight(w):
    """OIHW (C,C,3,3) -> (C_out, 9*C_in), tap-major / channel-minor, matching
    the im2col patch-row ordering t*C + ci."""
    O, I, KH, KW = w.shape
    return jnp.transpose(w, (0, 2, 3, 1)).reshape(O, KH * KW * I).astype(jnp.float32)


def residual_block(x_nchw, w1, b1, w2, b2):
    """x_nchw: (N, C, H, W). w*: (C, C, 3, 3) PyTorch OIHW. b*: (C,)."""
    N, C, H, W = x_nchw.shape
    HW = H * W
    G = W + 1

    x_flat = x_nchw.reshape(N, C, HW).astype(jnp.float32)   # no transpose, no pad
    tap_masks = _build_tap_masks(H, W)
    w1m, w2m = _pack_weight(w1), _pack_weight(w2)
    b1c = b1.reshape(C, 1).astype(jnp.float32)
    b2c = b2.reshape(C, 1).astype(jnp.float32)

    out_flat = pl.pallas_call(
        functools.partial(_residual_block_kernel, W=W),
        out_shape=jax.ShapeDtypeStruct((N, C, HW), jnp.float32),
        grid_spec=pltpu.PrefetchScalarGridSpec(
            num_scalar_prefetch=0,
            grid=(N,),
            in_specs=[
                pl.BlockSpec((1, C, HW), lambda n: (n, 0, 0)),   # x slab
                pl.BlockSpec((9, HW), lambda n: (0, 0)),         # tap masks
                pl.BlockSpec((C, 9 * C), lambda n: (0, 0)),      # w1
                pl.BlockSpec((C, 1), lambda n: (0, 0)),          # b1
                pl.BlockSpec((C, 9 * C), lambda n: (0, 0)),      # w2
                pl.BlockSpec((C, 1), lambda n: (0, 0)),          # b2
            ],
            out_specs=pl.BlockSpec((1, C, HW), lambda n: (n, 0, 0)),
            scratch_shapes=[
                pltpu.VMEM((C, HW + 2 * G), jnp.float32),        # guarded slab
                pltpu.VMEM((9 * C, HW), jnp.float32),            # im2col patches
            ],
        ),
        compiler_params=pltpu.CompilerParams(
            dimension_semantics=("parallel",)),
    )(x_flat, tap_masks, w1m, b1c, w2m, b2c)

    return out_flat.reshape(N, C, H, W)


def _reference(x_nchw, w1, b1, w2, b2):
    """Pure-JAX reference (mirrors F.conv2d semantics, NCHW)."""
    dn = jax.lax.conv_dimension_numbers(x_nchw.shape, w1.shape,
                                        ("NCHW", "OIHW", "NCHW"))
    y = jax.lax.conv_general_dilated(x_nchw, w1, (1, 1), ((1, 1), (1, 1)),
                                     dimension_numbers=dn)
    y = y + b1.reshape(1, -1, 1, 1)
    y = jnp.where(y > 0, y, NEG_SLOPE * y)
    y = jax.lax.conv_general_dilated(y, w2, (1, 1), ((1, 1), (1, 1)),
                                     dimension_numbers=dn)
    y = y + b2.reshape(1, -1, 1, 1)
    return x_nchw + y


if __name__ == "__main__":
    N, C, H, W = 2, 4, 16, 16

    key = jax.random.PRNGKey(0)
    kx, kw1, kb1, kw2, kb2 = jax.random.split(key, 5)

    x = jax.random.normal(kx, (N, C, H, W), jnp.float32)
    fan_in = C * 3 * 3
    bound = 1.0 / (fan_in ** 0.5)
    w1 = jax.random.uniform(kw1, (C, C, 3, 3), jnp.float32, -bound, bound)
    b1 = jax.random.uniform(kb1, (C,), jnp.float32, -bound, bound)
    w2 = jax.random.uniform(kw2, (C, C, 3, 3), jnp.float32, -bound, bound)
    b2 = jax.random.uniform(kb2, (C,), jnp.float32, -bound, bound)

    out = jax.block_until_ready(residual_block(x, w1, b1, w2, b2))
    ref = jax.block_until_ready(_reference(x, w1, b1, w2, b2))

    assert out.shape == (N, C, H, W)
    assert jnp.allclose(out, ref, atol=1e-4, rtol=1e-4), "mismatch vs reference"

    print("KERNEL_OK")
</pallas_src>

<mosaic_0001>
module attributes {stable_mosaic.version = 11 : i64} {
  func.func @_residual_block_kernel(%arg0: i32, %arg1: memref<1x4x256xf32, #tpu.memory_space<vmem>>, %arg2: memref<9x256xf32, #tpu.memory_space<vmem>>, %arg3: memref<4x36xf32, #tpu.memory_space<vmem>>, %arg4: memref<4x1xf32, #tpu.memory_space<vmem>>, %arg5: memref<4x36xf32, #tpu.memory_space<vmem>>, %arg6: memref<4x1xf32, #tpu.memory_space<vmem>>, %arg7: memref<1x4x256xf32, #tpu.memory_space<vmem>>, %arg8: memref<4x290xf32, #tpu.memory_space<vmem>>, %arg9: memref<36x256xf32, #tpu.memory_space<vmem>>) attributes {dimension_semantics = [#tpu.dimension_semantics<parallel>], iteration_bounds = array<i64: 2>, scalar_prefetch = 0 : i64, scratch_operands = 2 : i64, tpu.core_type = #tpu.core_type<tc>, window_params = [{transform_indices = @transform_0, window_bounds = array<i64: 1, 4, 256>}, {pipeline_mode = #tpu.pipeline_mode<synchronous>, transform_indices = @transform_1, window_bounds = array<i64: 9, 256>}, {pipeline_mode = #tpu.pipeline_mode<synchronous>, transform_indices = @transform_2, window_bounds = array<i64: 4, 36>}, {pipeline_mode = #tpu.pipeline_mode<synchronous>, transform_indices = @transform_3, window_bounds = array<i64: 4, 1>}, {pipeline_mode = #tpu.pipeline_mode<synchronous>, transform_indices = @transform_4, window_bounds = array<i64: 4, 36>}, {pipeline_mode = #tpu.pipeline_mode<synchronous>, transform_indices = @transform_5, window_bounds = array<i64: 4, 1>}, {transform_indices = @transform_6, window_bounds = array<i64: 1, 4, 256>}]} {
    %cst = arith.constant 0.000000e+00 : f32
    %0 = vector.broadcast %cst : f32 to vector<4x17xf32>
    %c0 = arith.constant 0 : index
    %c0_0 = arith.constant 0 : index
    %1 = vector.load %arg8[%c0, %c0_0] : memref<4x290xf32, #tpu.memory_space<vmem>>, vector<4x17xf32>
    tpu.vector_store %arg8[%c0, %c0_0], %0 {strides = array<i32>} : memref<4x290xf32, #tpu.memory_space<vmem>>, vector<4x17xf32>,
    %cst_1 = arith.constant 0.000000e+00 : f32
    %2 = vector.broadcast %cst_1 : f32 to vector<4x17xf32>
    %c0_2 = arith.constant 0 : index
    %c273 = arith.constant 273 : index
    %3 = vector.load %arg8[%c0_2, %c273] : memref<4x290xf32, #tpu.memory_space<vmem>>, vector<4x17xf32>
    tpu.vector_store %arg8[%c0_2, %c273], %2 {strides = array<i32>} : memref<4x290xf32, #tpu.memory_space<vmem>>, vector<4x17xf32>,
    %c0_3 = arith.constant 0 : index
    %c0_4 = arith.constant 0 : index
    %c0_5 = arith.constant 0 : index
    %4 = vector.load %arg1[%c0_3, %c0_4, %c0_5] : memref<1x4x256xf32, #tpu.memory_space<vmem>>, vector<1x4x256xf32>
    %5 = vector.shape_cast %4 : vector<1x4x256xf32> to vector<4x256xf32>
    %c0_6 = arith.constant 0 : index
    %c0_7 = arith.constant 0 : index
    %6 = vector.load %arg3[%c0_6, %c0_7] : memref<4x36xf32, #tpu.memory_space<vmem>>, vector<4x36xf32>
    %c0_8 = arith.constant 0 : index
    %c17 = arith.constant 17 : index
    %7 = vector.load %arg8[%c0_8, %c17] : memref<4x290xf32, #tpu.memory_space<vmem>>, vector<4x256xf32>
    tpu.vector_store %arg8[%c0_8, %c17], %5 {strides = array<i32>} : memref<4x290xf32, #tpu.memory_space<vmem>>, vector<4x256xf32>,
    %c0_9 = arith.constant 0 : index
    %c0_10 = arith.constant 0 : index
    %8 = vector.load %arg8[%c0_9, %c0_10] : memref<4x290xf32, #tpu.memory_space<vmem>>, vector<4x256xf32>
    %c0_11 = arith.constant 0 : index
    %c0_12 = arith.constant 0 : index
    %9 = vector.load %arg2[%c0_11, %c0_12] : memref<9x256xf32, #tpu.memory_space<vmem>>, vector<1x256xf32>
    %10 = vector.broadcast %9 : vector<1x256xf32> to vector<4x256xf32>
    %11 = arith.mulf %8, %10 : vector<4x256xf32>
    %c0_13 = arith.constant 0 : index
    %c0_14 = arith.constant 0 : index
    %12 = vector.load %arg9[%c0_13, %c0_14] : memref<36x256xf32, #tpu.memory_space<vmem>>, vector<4x256xf32>
    tpu.vector_store %arg9[%c0_13, %c0_14], %11 {strides = array<i32>} : memref<36x256xf32, #tpu.memory_space<vmem>>, vector<4x256xf32>,
    %c0_15 = arith.constant 0 : index
    %c1 = arith.constant 1 : index
    %13 = vector.load %arg8[%c0_15, %c1] : memref<4x290xf32, #tpu.memory_space<vmem>>, vector<4x256xf32>
    %c1_16 = arith.constant 1 : index
    %c0_17 = arith.constant 0 : index
    %14 = vector.load %arg2[%c1_16, %c0_17] : memref<9x256xf32, #tpu.memory_space<vmem>>, vector<1x256xf32>
    %15 = vector.broadcast %14 : vector<1x256xf32> to vector<4x256xf32>
    %16 = arith.mulf %13, %15 : vector<4x256xf32>
    %c4 = arith.constant 4 : index
    %c0_18 = arith.constant 0 : index
    %17 = vector.load %arg9[%c4, %c0_18] : memref<36x256xf32, #tpu.memory_space<vmem>>, vector<4x256xf32>
    tpu.vector_store %arg9[%c4, %c0_18], %16 {strides = array<i32>} : memref<36x256xf32, #tpu.memory_space<vmem>>, vector<4x256xf32>,
    %c0_19 = arith.constant 0 : index
    %c2 = arith.constant 2 : index
    %18 = vector.load %arg8[%c0_19, %c2] : memref<4x290xf32, #tpu.memory_space<vmem>>, vector<4x256xf32>
    %c2_20 = arith.constant 2 : index
    %c0_21 = arith.constant 0 : index
    %19 = vector.load %arg2[%c2_20, %c0_21] : memref<9x256xf32, #tpu.memory_space<vmem>>, vector<1x256xf32>
    %20 = vector.broadcast %19 : vector<1x256xf32> to vector<4x256xf32>
    %21 = arith.mulf %18, %20 : vector<4x256xf32>
    %c8 = arith.constant 8 : index
    %c0_22 = arith.constant 0 : index
    %22 = vector.load %arg9[%c8, %c0_22] : memref<36x256xf32, #tpu.memory_space<vmem>>, vector<4x256xf32>
    tpu.vector_store %arg9[%c8, %c0_22], %21 {strides = array<i32>} : memref<36x256xf32, #tpu.memory_space<vmem>>, vector<4x256xf32>,
    %c0_23 = arith.constant 0 : index
    %c16 = arith.constant 16 : index
    %23 = vector.load %arg8[%c0_23, %c16] : memref<4x290xf32, #tpu.memory_space<vmem>>, vector<4x256xf32>
    %c3 = arith.constant 3 : index
    %c0_24 = arith.constant 0 : index
    %24 = vector.load %arg2[%c3, %c0_24] : memref<9x256xf32, #tpu.memory_space<vmem>>, vector<1x256xf32>
    %25 = vector.broadcast %24 : vector<1x256xf32> to vector<4x256xf32>
    %26 = arith.mulf %23, %25 : vector<4x256xf32>
    %c12 = arith.constant 12 : index
    %c0_25 = arith.constant 0 : index
    %27 = vector.load %arg9[%c12, %c0_25] : memref<36x256xf32, #tpu.memory_space<vmem>>, vector<4x256xf32>
    tpu.vector_store %arg9[%c12, %c0_25], %26 {strides = array<i32>} : memref<36x256xf32, #tpu.memory_space<vmem>>, vector<4x256xf32>,
    %c0_26 = arith.constant 0 : index
    %c17_27 = arith.constant 17 : index
    %28 = vector.load %arg8[%c0_26, %c17_27] : memref<4x290xf32, #tpu.memory_space<vmem>>, vector<4x256xf32>
    %c16_28 = arith.constant 16 : index
    %c0_29 = arith.constant 0 : index
    %29 = vector.load %arg9[%c16_28, %c0_29] : memref<36x256xf32, #tpu.memory_space<vmem>>, vector<4x256xf32>
    tpu.vector_store %arg9[%c16_28, %c0_29], %28 {strides = array<i32>} : memref<36x256xf32, #tpu.memory_space<vmem>>, vector<4x256xf32>,
    %c0_30 = arith.constant 0 : index
    %c18 = arith.constant 18 : index
    %30 = vector.load %arg8[%c0_30, %c18] : memref<4x290xf32, #tpu.memory_space<vmem>>, vector<4x256xf32>
    %c5 = arith.constant 5 : index
    %c0_31 = arith.constant 0 : index
    %31 = vector.load %arg2[%c5, %c0_31] : memref<9x256xf32, #tpu.memory_space<vmem>>, vector<1x256xf32>
    %32 = vector.broadcast %31 : vector<1x256xf32> to vector<4x256xf32>
    %33 = arith.mulf %30, %32 : vector<4x256xf32>
    %c20 = arith.constant 20 : index
    %c0_32 = arith.constant 0 : index
    %34 = vector.load %arg9[%c20, %c0_32] : memref<36x256xf32, #tpu.memory_space<vmem>>, vector<4x256xf32>
    tpu.vector_store %arg9[%c20, %c0_32], %33 {strides = array<i32>} : memref<36x256xf32, #tpu.memory_space<vmem>>, vector<4x256xf32>,
    %c0_33 = arith.constant 0 : index
    %c32 = arith.constant 32 : index
    %35 = vector.load %arg8[%c0_33, %c32] : memref<4x290xf32, #tpu.memory_space<vmem>>, vector<4x256xf32>
    %c6 = arith.constant 6 : index
    %c0_34 = arith.constant 0 : index
    %36 = vector.load %arg2[%c6, %c0_34] : memref<9x256xf32, #tpu.memory_space<vmem>>, vector<1x256xf32>
    %37 = vector.broadcast %36 : vector<1x256xf32> to vector<4x256xf32>
    %38 = arith.mulf %35, %37 : vector<4x256xf32>
    %c24 = arith.constant 24 : index
    %c0_35 = arith.constant 0 : index
    %39 = vector.load %arg9[%c24, %c0_35] : memref<36x256xf32, #tpu.memory_space<vmem>>, vector<4x256xf32>
    tpu.vector_store %arg9[%c24, %c0_35], %38 {strides = array<i32>} : memref<36x256xf32, #tpu.memory_space<vmem>>, vector<4x256xf32>,
    %c0_36 = arith.constant 0 : index
    %c33 = arith.constant 33 : index
    %40 = vector.load %arg8[%c0_36, %c33] : memref<4x290xf32, #tpu.memory_space<vmem>>, vector<4x256xf32>
    %c7 = arith.constant 7 : index
    %c0_37 = arith.constant 0 : index
    %41 = vector.load %arg2[%c7, %c0_37] : memref<9x256xf32, #tpu.memory_space<vmem>>, vector<1x256xf32>
    %42 = vector.broadcast %41 : vector<1x256xf32> to vector<4x256xf32>
    %43 = arith.mulf %40, %42 : vector<4x256xf32>
    %c28 = arith.constant 28 : index
    %c0_38 = arith.constant 0 : index
    %44 = vector.load %arg9[%c28, %c0_38] : memref<36x256xf32, #tpu.memory_space<vmem>>, vector<4x256xf32>
    tpu.vector_store %arg9[%c28, %c0_38], %43 {strides = array<i32>} : memref<36x256xf32, #tpu.memory_space<vmem>>, vector<4x256xf32>,
    %c0_39 = arith.constant 0 : index
    %c34 = arith.constant 34 : index
    %45 = vector.load %arg8[%c0_39, %c34] : memref<4x290xf32, #tpu.memory_space<vmem>>, vector<4x256xf32>
    %c8_40 = arith.constant 8 : index
    %c0_41 = arith.constant 0 : index
    %46 = vector.load %arg2[%c8_40, %c0_41] : memref<9x256xf32, #tpu.memory_space<vmem>>, vector<1x256xf32>
    %47 = vector.broadcast %46 : vector<1x256xf32> to vector<4x256xf32>
    %48 = arith.mulf %45, %47 : vector<4x256xf32>
    %c32_42 = arith.constant 32 : index
    %c0_43 = arith.constant 0 : index
    %49 = vector.load %arg9[%c32_42, %c0_43] : memref<36x256xf32, #tpu.memory_space<vmem>>, vector<4x256xf32>
    tpu.vector_store %arg9[%c32_42, %c0_43], %48 {strides = array<i32>} : memref<36x256xf32, #tpu.memory_space<vmem>>, vector<4x256xf32>,
    %c0_44 = arith.constant 0 : index
    %c0_45 = arith.constant 0 : index
    %50 = vector.load %arg9[%c0_44, %c0_45] : memref<36x256xf32, #tpu.memory_space<vmem>>, vector<36x256xf32>
    %cst_46 = arith.constant dense<0.000000e+00> : vector<4x256xf32>
    %51 = tpu.matmul %6, %50, %cst_46 {dimension_numbers = #tpu.dot_dimension_numbers<[1], [0], [0], [1], [0, 0, 1, 1], [], []>} : vector<4x36xf32>, vector<36x256xf32>, vector<4x256xf32> -> vector<4x256xf32>
    %c0_47 = arith.constant 0 : index
    %c0_48 = arith.constant 0 : index
    %52 = vector.load %arg4[%c0_47, %c0_48] : memref<4x1xf32, #tpu.memory_space<vmem>>, vector<4x1xf32>
    %53 = vector.broadcast %52 : vector<4x1xf32> to vector<4x256xf32>
    %54 = arith.addf %51, %53 : vector<4x256xf32>
    %cst_49 = arith.constant 0.000000e+00 : f32
    %55 = vector.broadcast %cst_49 : f32 to vector<4x256xf32>
    %56 = arith.cmpf ogt, %54, %55 : vector<4x256xf32>
    %cst_50 = arith.constant 0.00999999977 : f32
    %57 = vector.broadcast %cst_50 : f32 to vector<4x256xf32>
    %58 = arith.mulf %57, %54 : vector<4x256xf32>
    %59 = arith.select %56, %54, %58 : vector<4x256xi1>, vector<4x256xf32>
    %c0_51 = arith.constant 0 : index
    %c0_52 = arith.constant 0 : index
    %60 = vector.load %arg5[%c0_51, %c0_52] : memref<4x36xf32, #tpu.memory_space<vmem>>, vector<4x36xf32>
    %c0_53 = arith.constant 0 : index
    %c17_54 = arith.constant 17 : index
    %61 = vector.load %arg8[%c0_53, %c17_54] : memref<4x290xf32, #tpu.memory_space<vmem>>, vector<4x256xf32>
    tpu.vector_store %arg8[%c0_53, %c17_54], %59 {strides = array<i32>} : memref<4x290xf32, #tpu.memory_space<vmem>>, vector<4x256xf32>,
    %c0_55 = arith.constant 0 : index
    %c0_56 = arith.constant 0 : index
    %62 = vector.load %arg8[%c0_55, %c0_56] : memref<4x290xf32, #tpu.memory_space<vmem>>, vector<4x256xf32>
    %c0_57 = arith.constant 0 : index
    %c0_58 = arith.constant 0 : index
    %63 = vector.load %arg2[%c0_57, %c0_58] : memref<9x256xf32, #tpu.memory_space<vmem>>, vector<1x256xf32>
    %64 = vector.broadcast %63 : vector<1x256xf32> to vector<4x256xf32>
    %65 = arith.mulf %62, %64 : vector<4x256xf32>
    %c0_59 = arith.constant 0 : index
    %c0_60 = arith.constant 0 : index
    %66 = vector.load %arg9[%c0_59, %c0_60] : memref<36x256xf32, #tpu.memory_space<vmem>>, vector<4x256xf32>
    tpu.vector_store %arg9[%c0_59, %c0_60], %65 {strides = array<i32>} : memref<36x256xf32, #tpu.memory_space<vmem>>, vector<4x256xf32>,
    %c0_61 = arith.constant 0 : index
    %c1_62 = arith.constant 1 : index
    %67 = vector.load %arg8[%c0_61, %c1_62] : memref<4x290xf32, #tpu.memory_space<vmem>>, vector<4x256xf32>
    %c1_63 = arith.constant 1 : index
    %c0_64 = arith.constant 0 : index
    %68 = vector.load %arg2[%c1_63, %c0_64] : memref<9x256xf32, #tpu.memory_space<vmem>>, vector<1x256xf32>
    %69 = vector.broadcast %68 : vector<1x256xf32> to vector<4x256xf32>
    %70 = arith.mulf %67, %69 : vector<4x256xf32>
    %c4_65 = arith.constant 4 : index
    %c0_66 = arith.constant 0 : index
    %71 = vector.load %arg9[%c4_65, %c0_66] : memref<36x256xf32, #tpu.memory_space<vmem>>, vector<4x256xf32>
    tpu.vector_store %arg9[%c4_65, %c0_66], %70 {strides = array<i32>} : memref<36x256xf32, #tpu.memory_space<vmem>>, vector<4x256xf32>,
    %c0_67 = arith.constant 0 : index
    %c2_68 = arith.constant 2 : index
    %72 = vector.load %arg8[%c0_67, %c2_68] : memref<4x290xf32, #tpu.memory_space<vmem>>, vector<4x256xf32>
    %c2_69 = arith.constant 2 : index
    %c0_70 = arith.constant 0 : index
    %73 = vector.load %arg2[%c2_69, %c0_70] : memref<9x256xf32, #tpu.memory_space<vmem>>, vector<1x256xf32>
    %74 = vector.broadcast %73 : vector<1x256xf32> to vector<4x256xf32>
    %75 = arith.mulf %72, %74 : vector<4x256xf32>
    %c8_71 = arith.constant 8 : index
    %c0_72 = arith.constant 0 : index
    %76 = vector.load %arg9[%c8_71, %c0_72] : memref<36x256xf32, #tpu.memory_space<vmem>>, vector<4x256xf32>
    tpu.vector_store %arg9[%c8_71, %c0_72], %75 {strides = array<i32>} : memref<36x256xf32, #tpu.memory_space<vmem>>, vector<4x256xf32>,
    %c0_73 = arith.constant 0 : index
    %c16_74 = arith.constant 16 : index
    %77 = vector.load %arg8[%c0_73, %c16_74] : memref<4x290xf32, #tpu.memory_space<vmem>>, vector<4x256xf32>
    %c3_75 = arith.constant 3 : index
    %c0_76 = arith.constant 0 : index
    %78 = vector.load %arg2[%c3_75, %c0_76] : memref<9x256xf32, #tpu.memory_space<vmem>>, vector<1x256xf32>
    %79 = vector.broadcast %78 : vector<1x256xf32> to vector<4x256xf32>
    %80 = arith.mulf %77, %79 : vector<4x256xf32>
    %c12_77 = arith.constant 12 : index
    %c0_78 = arith.constant 0 : index
    %81 = vector.load %arg9[%c12_77, %c0_78] : memref<36x256xf32, #tpu.memory_space<vmem>>, vector<4x256xf32>
    tpu.vector_store %arg9[%c12_77, %c0_78], %80 {strides = array<i32>} : memref<36x256xf32, #tpu.memory_space<vmem>>, vector<4x256xf32>,
    %c0_79 = arith.constant 0 : index
    %c17_80 = arith.constant 17 : index
    %82 = vector.load %arg8[%c0_79, %c17_80] : memref<4x290xf32, #tpu.memory_space<vmem>>, vector<4x256xf32>
    %c16_81 = arith.constant 16 : index
    %c0_82 = arith.constant 0 : index
    %83 = vector.load %arg9[%c16_81, %c0_82] : memref<36x256xf32, #tpu.memory_space<vmem>>, vector<4x256xf32>
    tpu.vector_store %arg9[%c16_81, %c0_82], %82 {strides = array<i32>} : memref<36x256xf32, #tpu.memory_space<vmem>>, vector<4x256xf32>,
    %c0_83 = arith.constant 0 : index
    %c18_84 = arith.constant 18 : index
    %84 = vector.load %arg8[%c0_83, %c18_84] : memref<4x290xf32, #tpu.memory_space<vmem>>, vector<4x256xf32>
    %c5_85 = arith.constant 5 : index
    %c0_86 = arith.constant 0 : index
    %85 = vector.load %arg2[%c5_85, %c0_86] : memref<9x256xf32, #tpu.memory_space<vmem>>, vector<1x256xf32>
    %86 = vector.broadcast %85 : vector<1x256xf32> to vector<4x256xf32>
    %87 = arith.mulf %84, %86 : vector<4x256xf32>
    %c20_87 = arith.constant 20 : index
    %c0_88 = arith.constant 0 : index
    %88 = vector.load %arg9[%c20_87, %c0_88] : memref<36x256xf32, #tpu.memory_space<vmem>>, vector<4x256xf32>
    tpu.vector_store %arg9[%c20_87, %c0_88], %87 {strides = array<i32>} : memref<36x256xf32, #tpu.memory_space<vmem>>, vector<4x256xf32>,
    %c0_89 = arith.constant 0 : index
    %c32_90 = arith.constant 32 : index
    %89 = vector.load %arg8[%c0_89, %c32_90] : memref<4x290xf32, #tpu.memory_space<vmem>>, vector<4x256xf32>
    %c6_91 = arith.constant 6 : index
    %c0_92 = arith.constant 0 : index
    %90 = vector.load %arg2[%c6_91, %c0_92] : memref<9x256xf32, #tpu.memory_space<vmem>>, vector<1x256xf32>
    %91 = vector.broadcast %90 : vector<1x256xf32> to vector<4x256xf32>
    %92 = arith.mulf %89, %91 : vector<4x256xf32>
    %c24_93 = arith.constant 24 : index
    %c0_94 = arith.constant 0 : index
    %93 = vector.load %arg9[%c24_93, %c0_94] : memref<36x256xf32, #tpu.memory_space<vmem>>, vector<4x256xf32>
    tpu.vector_store %arg9[%c24_93, %c0_94], %92 {strides = array<i32>} : memref<36x256xf32, #tpu.memory_space<vmem>>, vector<4x256xf32>,
    %c0_95 = arith.constant 0 : index
    %c33_96 = arith.constant 33 : index
    %94 = vector.load %arg8[%c0_95, %c33_96] : memref<4x290xf32, #tpu.memory_space<vmem>>, vector<4x256xf32>
    %c7_97 = arith.constant 7 : index
    %c0_98 = arith.constant 0 : index
    %95 = vector.load %arg2[%c7_97, %c0_98] : memref<9x256xf32, #tpu.memory_space<vmem>>, vector<1x256xf32>
    %96 = vector.broadcast %95 : vector<1x256xf32> to vector<4x256xf32>
    %97 = arith.mulf %94, %96 : vector<4x256xf32>
    %c28_99 = arith.constant 28 : index
    %c0_100 = arith.constant 0 : index
    %98 = vector.load %arg9[%c28_99, %c0_100] : memref<36x256xf32, #tpu.memory_space<vmem>>, vector<4x256xf32>
    tpu.vector_store %arg9[%c28_99, %c0_100], %97 {strides = array<i32>} : memref<36x256xf32, #tpu.memory_space<vmem>>, vector<4x256xf32>,
    %c0_101 = arith.constant 0 : index
    %c34_102 = arith.constant 34 : index
    %99 = vector.load %arg8[%c0_101, %c34_102] : memref<4x290xf32, #tpu.memory_space<vmem>>, vector<4x256xf32>
    %c8_103 = arith.constant 8 : index
    %c0_104 = arith.constant 0 : index
    %100 = vector.load %arg2[%c8_103, %c0_104] : memref<9x256xf32, #tpu.memory_space<vmem>>, vector<1x256xf32>
    %101 = vector.broadcast %100 : vector<1x256xf32> to vector<4x256xf32>
    %102 = arith.mulf %99, %101 : vector<4x256xf32>
    %c32_105 = arith.constant 32 : index
    %c0_106 = arith.constant 0 : index
    %103 = vector.load %arg9[%c32_105, %c0_106] : memref<36x256xf32, #tpu.memory_space<vmem>>, vector<4x256xf32>
    tpu.vector_store %arg9[%c32_105, %c0_106], %102 {strides = array<i32>} : memref<36x256xf32, #tpu.memory_space<vmem>>, vector<4x256xf32>,
    %c0_107 = arith.constant 0 : index
    %c0_108 = arith.constant 0 : index
    %104 = vector.load %arg9[%c0_107, %c0_108] : memref<36x256xf32, #tpu.memory_space<vmem>>, vector<36x256xf32>
    %cst_109 = arith.constant dense<0.000000e+00> : vector<4x256xf32>
    %105 = tpu.matmul %60, %104, %cst_109 {dimension_numbers = #tpu.dot_dimension_numbers<[1], [0], [0], [1], [0, 0, 1, 1], [], []>} : vector<4x36xf32>, vector<36x256xf32>, vector<4x256xf32> -> vector<4x256xf32>
    %c0_110 = arith.constant 0 : index
    %c0_111 = arith.constant 0 : index
    %106 = vector.load %arg6[%c0_110, %c0_111] : memref<4x1xf32, #tpu.memory_space<vmem>>, vector<4x1xf32>
    %107 = vector.broadcast %106 : vector<4x1xf32> to vector<4x256xf32>
    %108 = arith.addf %105, %107 : vector<4x256xf32>
    %109 = arith.addf %5, %108 : vector<4x256xf32>
    %c0_112 = arith.constant 0 : index
    %c0_113 = arith.constant 0 : index
    %c0_114 = arith.constant 0 : index
    %110 = vector.load %arg7[%c0_112, %c0_113, %c0_114] : memref<1x4x256xf32, #tpu.memory_space<vmem>>, vector<1x4x256xf32>
    %111 = vector.shape_cast %110 : vector<1x4x256xf32> to vector<4x256xf32>
    %112 = vector.shape_cast %109 : vector<4x256xf32> to vector<1x4x256xf32>
    tpu.vector_store %arg7[%c0_112, %c0_113, %c0_114], %112 {strides = array<i32>} : memref<1x4x256xf32, #tpu.memory_space<vmem>>, vector<1x4x256xf32>,
    return
  }
  func.func @transform_0(%arg0: i32) -> (i32, i32, i32) {
    %c0_i32 = arith.constant 0 : i32
    %c0_i32_0 = arith.constant 0 : i32
    %c0_i32_1 = arith.constant 0 : i32
    return %arg0, %c0_i32, %c0_i32_0 : i32, i32, i32
  }
  func.func @transform_1(%arg0: i32) -> (i32, i32) {
    %c0_i32 = arith.constant 0 : i32
    %c0_i32_0 = arith.constant 0 : i32
    %c0_i32_1 = arith.constant 0 : i32
    return %c0_i32, %c0_i32_0 : i32, i32
  }
  func.func @transform_2(%arg0: i32) -> (i32, i32) {
    %c0_i32 = arith.constant 0 : i32
    %c0_i32_0 = arith.constant 0 : i32
    %c0_i32_1 = arith.constant 0 : i32
    return %c0_i32, %c0_i32_0 : i32, i32
  }
  func.func @transform_3(%arg0: i32) -> (i32, i32) {
    %c0_i32 = arith.constant 0 : i32
    %c0_i32_0 = arith.constant 0 : i32
    %c0_i32_1 = arith.constant 0 : i32
    return %c0_i32, %c0_i32_0 : i32, i32
  }
  func.func @transform_4(%arg0: i32) -> (i32, i32) {
    %c0_i32 = arith.constant 0 : i32
    %c0_i32_0 = arith.constant 0 : i32
    %c0_i32_1 = arith.constant 0 : i32
    return %c0_i32, %c0_i32_0 : i32, i32
  }
  func.func @transform_5(%arg0: i32) -> (i32, i32) {
    %c0_i32 = arith.constant 0 : i32
    %c0_i32_0 = arith.constant 0 : i32
    %c0_i32_1 = arith.constant 0 : i32
    return %c0_i32, %c0_i32_0 : i32, i32
  }
  func.func @transform_6(%arg0: i32) -> (i32, i32, i32) {
    %c0_i32 = arith.constant 0 : i32
    %c0_i32_0 = arith.constant 0 : i32
    %c0_i32_1 = arith.constant 0 : i32
    return %arg0, %c0_i32, %c0_i32_0 : i32, i32, i32
  }
}

</mosaic_0001>

<llo_original>
// kernel: tpu_custom_call.1
$region0: #{tpu_custom_call.1}
  #allocation0 [shape = 'u32[]', space=smem, size = 0x4, offset = 0x4, fixed_abs, tag = 'smem constant byte address 0x4 - core index']
  #allocation1 [shape = 'u32[72,128]{1,0:T(1,128)}', space=vmem, size = 0x9000, scoped, tag = 'internal scratch']
  #allocation2 [shape = 'f32[4,290]{1,0:T(4,128)}', space=vmem, size = 0x1800, scoped, tag = 'scratch operand']
  #allocation3 [shape = 'f32[36,256]{1,0:T(8,128)}', space=vmem, size = 0xa000, scoped, tag = 'scratch operand']
  %s0 = inlined_call_operand.hbm [shape: f32[2,4,256], index: 0, kind: input, shape index: {}]
  %s1 = inlined_call_operand.hbm [shape: f32[9,256], index: 1, kind: input, shape index: {}]
  %s2 = inlined_call_operand.vmem [shape: f32[4,36], index: 2, kind: input, shape index: {}]
  %s3 = inlined_call_operand.vmem [shape: f32[4,1], index: 3, kind: input, shape index: {}]
  %s4 = inlined_call_operand.vmem [shape: f32[4,36], index: 4, kind: input, shape index: {}]
  %s5 = inlined_call_operand.vmem [shape: f32[4,1], index: 5, kind: input, shape index: {}]
  %s6 = inlined_call_operand.hbm [shape: f32[2,4,256], index: 6, kind: output, shape index: {}]
  %s7 = sld [smem:[#allocation0]]
  $region65: #{tpu_custom_call.1} parent=0
    _
  %s9 = ssub.s32 1, %s7
  %s10 = scalar_select 0, %s9, %s7
  $region1: #{tpu_custom_call.1} parent=0
    #allocation4 [shape = 'u8[8192]{0}', space=vmem, size = 0x2000, scoped, tag = 'input window, operand 0']
    #allocation5 [shape = 's32[2]{0}', space=sflag, size = 0x8, scoped, tag = 'scoped memory for tpu_custom_call.1']
    #allocation6 [shape = 's32[2]{0}', space=sflag, size = 0x8, scoped, tag = 'scoped memory for tpu_custom_call.1']
    #allocation7 [shape = 'u8[16384]{0}', space=vmem, size = 0x4000, scoped, tag = 'input window, operand 1, single buffered']
    #allocation8 [shape = 's32[1]{0}', space=sflag, size = 0x4, scoped, tag = 'scoped memory for tpu_custom_call.1']
    #allocation9 [shape = 'u8[8192]{0}', space=vmem, size = 0x2000, scoped, tag = 'output window, operand 0']
    %11 = vsyncpa [#allocation5], 0
    %s12 = scalar_lea.sflag [#allocation5], 1
    %13 = vsyncpa %s12, 0
    %14 = vsyncpa [#allocation8], 0
    %15 = vsyncpa [#allocation6], 0
    %s16 = scalar_lea.sflag [#allocation6], 1
    %17 = vsyncpa %s16, 0
    loop: start=0, step=1, limit=4
    $region2: #{tpu_custom_call.1} parent=1 // loop_pre_header
      _
    $region3: #{tpu_custom_call.1} parent=1 // loop_header
      %s19 = sphi 0, %s23
      %p20 = scmp.ge.s32.totalorder %s19, 4
      %s29 = sphi 0, %s31
      %s32 = sphi 0, %s29
      %s33 = sphi 0, %s32
      %s49 = sphi 0, %s33
      %s53 = sphi 0, %s53
      %s55 = sphi 0, %s53
      %s56 = sphi 0, %s55
      %s70 = sphi 0, %s56
      %s74 = sphi 0, %s74
      %s76 = sphi 0, %s74
      %s77 = sphi 0, %s76
      %s91 = sphi 0, %s77
      %s95 = sphi 0, %s95
      %s97 = sphi 0, %s95
      %s98 = sphi 0, %s97
      %s112 = sphi 0, %s98
      %s116 = sphi 0, %s116
      %s118 = sphi 0, %s116
      %s119 = sphi 0, %s118
      %s133 = sphi 0, %s119
      %s137 = sphi 0, %s137
      %s139 = sphi 0, %s137
      %s140 = sphi 0, %s139
      %s154 = sphi 0, %s140
      %s160 = sphi 0, %s162
      %s163 = sphi 0, %s160
      %s164 = sphi 0, %s163
      %s180 = sphi 0, %s164
    $region4: #{tpu_custom_call.1} parent=1 // loop_header_branch
      %22 = sbr.rel (%p20) target = $region8
    $region5: #{tpu_custom_call.1} parent=1 // loop_body
      %s24 = ssub.s32 %s19, 1
      %s25 = ssub.s32 %s19, 2
      %s26 = sadd.s32 %s19, 1
      %s27 = ssub.s32 %s19, %s26
      %p28 = scmp.eq.s32.totalorder %s27, 0
      %s30 = sadd.s32 %s29, 1
      %s31 = scalar_select %p28, %s29, %s30
      %p34 = pneg %p28
      %p35 = scmp.eq.s32.totalorder %s19, 1
      %p36 = por %p34, %p35
      %p37 = scmp.ne.s32.totalorder %s29, %s32
      %p38 = scmp.eq.s32.totalorder %s19, 0
      %p39 = por %p37, %p38
      %p40 = scmp.ne.s32.totalorder %s29, %s32
      %p41 = scmp.eq.s32.totalorder %s24, 1
      %p42 = por %p40, %p41
      %p43 = scmp.ne.s32.totalorder %s32, %s33
      %p44 = scmp.eq.s32.totalorder %s24, 0
      %p45 = por %p43, %p44
      %p46 = scmp.ne.s32.totalorder %s32, %s33
      %p47 = scmp.eq.s32.totalorder %s25, 1
      %p48 = por %p46, %p47
      %p50 = scmp.ne.s32.totalorder %s33, %s49
      %p51 = scmp.eq.s32.totalorder %s25, 0
      %p52 = por %p50, %p51
      %s54 = sadd.s32 %s53, 1
      %p57 = scmp.eq.s32.totalorder %s19, 1
      %p58 = scmp.ne.s32.totalorder %s53, %s55
      %p59 = scmp.eq.s32.totalorder %s19, 0
      %p60 = por %p58, %p59
      %p61 = scmp.ne.s32.totalorder %s53, %s55
      %p62 = scmp.eq.s32.totalorder %s24, 1
      %p63 = por %p61, %p62
      %p64 = scmp.ne.s32.totalorder %s55, %s56
      %p65 = scmp.eq.s32.totalorder %s24, 0
      %p66 = por %p64, %p65
      %p67 = scmp.ne.s32.totalorder %s55, %s56
      %p68 = scmp.eq.s32.totalorder %s25, 1
      %p69 = por %p67, %p68
      %p71 = scmp.ne.s32.totalorder %s56, %s70
      %p72 = scmp.eq.s32.totalorder %s25, 0
      %p73 = por %p71, %p72
      %s75 = sadd.s32 %s74, 1
      %p78 = scmp.eq.s32.totalorder %s19, 1
      %p79 = scmp.ne.s32.totalorder %s74, %s76
      %p80 = scmp.eq.s32.totalorder %s19, 0
      %p81 = por %p79, %p80
      %p82 = scmp.ne.s32.totalorder %s74, %s76
      %p83 = scmp.eq.s32.totalorder %s24, 1
      %p84 = por %p82, %p83
      %p85 = scmp.ne.s32.totalorder %s76, %s77
      %p86 = scmp.eq.s32.totalorder %s24, 0
      %p87 = por %p85, %p86
      %p88 = scmp.ne.s32.totalorder %s76, %s77
      %p89 = scmp.eq.s32.totalorder %s25, 1
      %p90 = por %p88, %p89
      %p92 = scmp.ne.s32.totalorder %s77, %s91
      %p93 = scmp.eq.s32.totalorder %s25, 0
      %p94 = por %p92, %p93
      %s96 = sadd.s32 %s95, 1
      %p99 = scmp.eq.s32.totalorder %s19, 1
      %p100 = scmp.ne.s32.totalorder %s95, %s97
      %p101 = scmp.eq.s32.totalorder %s19, 0
      %p102 = por %p100, %p101
      %p103 = scmp.ne.s32.totalorder %s95, %s97
      %p104 = scmp.eq.s32.totalorder %s24, 1
      %p105 = por %p103, %p104
      %p106 = scmp.ne.s32.totalorder %s97, %s98
      %p107 = scmp.eq.s32.totalorder %s24, 0
      %p108 = por %p106, %p107
      %p109 = scmp.ne.s32.totalorder %s97, %s98
      %p110 = scmp.eq.s32.totalorder %s25, 1
      %p111 = por %p109, %p110
      %p113 = scmp.ne.s32.totalorder %s98, %s112
      %p114 = scmp.eq.s32.totalorder %s25, 0
      %p115 = por %p113, %p114
      %s117 = sadd.s32 %s116, 1
      %p120 = scmp.eq.s32.totalorder %s19, 1
      %p121 = scmp.ne.s32.totalorder %s116, %s118
      %p122 = scmp.eq.s32.totalorder %s19, 0
      %p123 = por %p121, %p122
      %p124 = scmp.ne.s32.totalorder %s116, %s118
      %p125 = scmp.eq.s32.totalorder %s24, 1
      %p126 = por %p124, %p125
      %p127 = scmp.ne.s32.totalorder %s118, %s119
      %p128 = scmp.eq.s32.totalorder %s24, 0
      %p129 = por %p127, %p128
      %p130 = scmp.ne.s32.totalorder %s118, %s119
      %p131 = scmp.eq.s32.totalorder %s25, 1
      %p132 = por %p130, %p131
      %p134 = scmp.ne.s32.totalorder %s119, %s133
      %p135 = scmp.eq.s32.totalorder %s25, 0
      %p136 = por %p134, %p135
      %s138 = sadd.s32 %s137, 1
      %p141 = scmp.eq.s32.totalorder %s19, 1
      %p142 = scmp.ne.s32.totalorder %s137, %s139
      %p143 = scmp.eq.s32.totalorder %s19, 0
      %p144 = por %p142, %p143
      %p145 = scmp.ne.s32.totalorder %s137, %s139
      %p146 = scmp.eq.s32.totalorder %s24, 1
      %p147 = por %p145, %p146
      %p148 = scmp.ne.s32.totalorder %s139, %s140
      %p149 = scmp.eq.s32.totalorder %s24, 0
      %p150 = por %p148, %p149
      %p151 = scmp.ne.s32.totalorder %s139, %s140
      %p152 = scmp.eq.s32.totalorder %s25, 1
      %p153 = por %p151, %p152
      %p155 = scmp.ne.s32.totalorder %s140, %s154
      %p156 = scmp.eq.s32.totalorder %s25, 0
      %p157 = por %p155, %p156
      %s158 = ssub.s32 %s19, %s26
      %p159 = scmp.eq.s32.totalorder %s158, 0
      %s161 = sadd.s32 %s160, 1
      %s162 = scalar_select %p159, %s160, %s161
      %p165 = pneg %p159
      %p166 = scmp.eq.s32.totalorder %s19, 1
      %p167 = por %p165, %p166
      %p168 = scmp.ne.s32.totalorder %s160, %s163
      %p169 = scmp.eq.s32.totalorder %s19, 0
      %p170 = por %p168, %p169
      %p171 = scmp.ne.s32.totalorder %s160, %s163
      %p172 = scmp.eq.s32.totalorder %s24, 1
      %p173 = por %p171, %p172
      %p174 = scmp.ne.s32.totalorder %s163, %s164
      %p175 = scmp.eq.s32.totalorder %s24, 0
      %p176 = por %p174, %p175
      %p177 = scmp.ne.s32.totalorder %s163, %s164
      %p178 = scmp.eq.s32.totalorder %s25, 1
      %p179 = por %p177, %p178
      %p181 = scmp.ne.s32.totalorder %s164, %s180
      %p182 = scmp.eq.s32.totalorder %s25, 0
      %p183 = por %p181, %p182
      %p184 = scmp.le.s32.totalorder 1, %s19
      %p185 = scmp.lt.s32.totalorder %s19, 3
      %p186 = pnand %p184, %p185
      %p187 = pneg %p186
      // Predicated region
      $region9: #{tpu_custom_call.1} parent=5 // pred_check
        _
      $region10: #{tpu_custom_call.1} parent=5 // pred_check_branch
        %189 = sbr.rel (%p186) target = $region12
      $region11: #{tpu_custom_call.1} parent=5 // pred_region
        %s190 = ssub.s32 %s19, 1
        // Predicated region
        $region13: #{tpu_custom_call.1} parent=11 // pred_check
          %p191 = pneg %p66
        $region14: #{tpu_custom_call.1} parent=11 // pred_check_branch
          %193 = sbr.rel (%p191) target = $region16
        $region15: #{tpu_custom_call.1} parent=11 // pred_region
          %195 = vsyncadd [#allocation8], 0
          %s196 = sshll.u32 %s1, 4
          %s197 = int_to_ptr.hbm [resolvable:$true] %s196
          %s198 = sshll.u32 [#allocation7], 4
          %s199 = int_to_ptr.vmem [resolvable:$true] %s198
          %204 = dma.hbm_to_vmem [thread:$0]  %s197, 512, %s199, [#allocation8], 256, 256, 16
        $region16: #{tpu_custom_call.1} parent=11 // pred_fallthru
          _
        // Predicated region
        $region17: #{tpu_custom_call.1} parent=11 // pred_check
          %p205 = pneg %p87
        $region18: #{tpu_custom_call.1} parent=11 // pred_check_branch
          %207 = sbr.rel (%p205) target = $region20
        $region19: #{tpu_custom_call.1} parent=11 // pred_region
          _
        $region20: #{tpu_custom_call.1} parent=11 // pred_fallthru
          _
        // Predicated region
        $region21: #{tpu_custom_call.1} parent=11 // pred_check
          %p208 = pneg %p108
        $region22: #{tpu_custom_call.1} parent=11 // pred_check_branch
          %210 = sbr.rel (%p208) target = $region24
        $region23: #{tpu_custom_call.1} parent=11 // pred_region
          _
        $region24: #{tpu_custom_call.1} parent=11 // pred_fallthru
          _
        // Predicated region
        $region25: #{tpu_custom_call.1} parent=11 // pred_check
          %p211 = pneg %p129
        $region26: #{tpu_custom_call.1} parent=11 // pred_check_branch
          %213 = sbr.rel (%p211) target = $region28
        $region27: #{tpu_custom_call.1} parent=11 // pred_region
          _
        $region28: #{tpu_custom_call.1} parent=11 // pred_fallthru
          _
        // Predicated region
        $region29: #{tpu_custom_call.1} parent=11 // pred_check
          %p214 = pneg %p150
        $region30: #{tpu_custom_call.1} parent=11 // pred_check_branch
          %216 = sbr.rel (%p214) target = $region32
        $region31: #{tpu_custom_call.1} parent=11 // pred_region
          _
        $region32: #{tpu_custom_call.1} parent=11 // pred_fallthru
          _
      $region12: #{tpu_custom_call.1} parent=5 // pred_fallthru
        _
      %p217 = scmp.lt.s32.totalorder %s19, 2
      // Predicated region
      $region33: #{tpu_custom_call.1} parent=5 // pred_check
        %p218 = pneg %p217
      $region34: #{tpu_custom_call.1} parent=5 // pred_check_branch
        %220 = sbr.rel (%p218) target = $region36
      $region35: #{tpu_custom_call.1} parent=5 // pred_region
        // Predicated region
        $region37: #{tpu_custom_call.1} parent=35 // pred_check
          %p221 = pneg %p39
        $region38: #{tpu_custom_call.1} parent=35 // pred_check_branch
          %223 = sbr.rel (%p221) target = $region40
        $region39: #{tpu_custom_call.1} parent=35 // pred_region
          %s224 = sand.u32 %s29, 1
          %s225 = scalar_lea.sflag [#allocation5], %s224
          %s226 = sand.u32 %s29, 1
          %s227 = smul.addr %s226, 8
          %s228 = scalar_lea.vmem [#allocation4], %s227
          %230 = vsyncadd %s225, 0
          %s231 = smul.addr %s19, 2
          %s232 = smul.addr %s231, 4
          %s233 = scalar_lea.hbm %s0, %s232
          %s235 = sshll.u32 %s233, 4
          %s236 = int_to_ptr.hbm [resolvable:$true] %s235
          %s237 = sshll.u32 %s228, 4
          %s238 = int_to_ptr.vmem [resolvable:$true] %s237
          %240 = dma.hbm_to_vmem [thread:$0]  %s236, 128, %s238, %s225
        $region40: #{tpu_custom_call.1} parent=35 // pred_fallthru
          _
      $region36: #{tpu_custom_call.1} parent=5 // pred_fallthru
        _
      %p241 = scmp.le.s32.totalorder 1, %s19
      %p242 = scmp.lt.s32.totalorder %s19, 3
      %p243 = pnand %p241, %p242
      %p244 = pneg %p243
      // Predicated region
      $region41: #{tpu_custom_call.1} parent=5 // pred_check
        _
      $region42: #{tpu_custom_call.1} parent=5 // pred_check_branch
        %246 = sbr.rel (%p243) target = $region44
      $region43: #{tpu_custom_call.1} parent=5 // pred_region
        %s247 = ssub.s32 %s19, 1
        %s248 = sand.u32 %s32, 1
        %s249 = scalar_lea.sflag [#allocation5], %s248
        %s250 = sand.u32 %s32, 1
        %s251 = smul.addr %s250, 8
        %s252 = scalar_lea.vmem [#allocation4], %s251
        // Predicated region
        $region45: #{tpu_custom_call.1} parent=43 // pred_check
          %p253 = pneg %p45
        $region46: #{tpu_custom_call.1} parent=43 // pred_check_branch
          %255 = sbr.rel (%p253) target = $region48
        $region47: #{tpu_custom_call.1} parent=43 // pred_region
          %257 = dma.done %s249, 128
        $region48: #{tpu_custom_call.1} parent=43 // pred_fallthru
          _
        // Predicated region
        $region49: #{tpu_custom_call.1} parent=43 // pred_check
          %p258 = pneg %p66
        $region50: #{tpu_custom_call.1} parent=43 // pred_check_branch
          %260 = sbr.rel (%p258) target = $region52
        $region51: #{tpu_custom_call.1} parent=43 // pred_region
          %262 = dma.done [#allocation8], 512
        $region52: #{tpu_custom_call.1} parent=43 // pred_fallthru
          _
        %s263 = sand.u32 %s32, 1
        %s264 = scalar_lea.sflag [#allocation5], %s263
        %s265 = sand.u32 %s32, 1
        %s266 = smul.addr %s265, 8
        %s267 = scalar_lea.vmem [#allocation4], %s266
        %p268 = pneg %p45
        %p269 = pneg %p42
        %p270 = pneg %p66
        %p271 = pneg %p63
        %p272 = pneg %p87
        %p273 = pneg %p84
        %p274 = pneg %p108
        %p275 = pneg %p105
        %p276 = pneg %p129
        %p277 = pneg %p126
        %p278 = pneg %p150
        %p279 = pneg %p147
        %p280 = pneg %p176
        %p281 = pneg %p173
        %s282 = sand.u32 %s163, 1
        %s283 = scalar_lea.sflag [#allocation6], %s282
        %s284 = sand.u32 %s163, 1
        %s285 = smul.addr %s284, 8
        %s286 = scalar_lea.vmem [#allocation9], %s285
        %vm287 = vcmask 134144
        %288 = vst.msk [vmem:[#allocation2] sm:$0xf] %vm287, 0.0
        %vm289 = vcmask 273544
        %290 = vst.msk [vmem:[#allocation2 + $0x8] sm:$0xf] %vm289, 0.0
        %v291 = vld [vmem:[%s252] sm:$0xff]
        %v292 = vld [vmem:[%s2] sm:$0xf]
        %294 = vrot.lane.b32.xlu0 %v291, 17
        %v295 = vpop.permute.xlu0 %294
        %v296 = vrot.slane %v295, 4
        %vm297 = vcmask 138240
        %v298 = vsel %vm297, %v296, %v295
        %vm301 = vcmask 1043592
        %vm302 = vcmask 1047556
        %vm303 = vmor %vm302, %vm301
        %304 = vst.msk [vmem:[#allocation2] sm:$0xff] %vm303, %v298
        %305 = vst.msk [vmem:[#allocation2 + $0x8] sm:$0xf] %vm287, %v296
        %v306 = vld [vmem:[#allocation2] sm:$0xff]
        %v307 = vld [vmem:[#allocation7] ss:$8 sm:$0x3]
        %v309 = vperm.slane %v307, 0
        %v310 = vperm.slane %v307, 1
        %v311 = vrot.slane %v310, 4
        %vm312 = vcmask 1043456
        %v313 = vsel %vm312, %v309, %v311
        %v315 = vmul.f32 %v306, %v313
        %317 = vst [vmem:[#allocation1] ss:$2 sm:$0xff] %v315
        %v318 = vld.sshfl [vmem:[#allocation1] sm:$0xff pattern:$0x75316420]
        %v319 = vld.sshfl [vmem:[#allocation1 + $0x8] sm:$0xff pattern:$0x75316420]
        %322 = vst [vmem:[#allocation3] sm:$0xf] %v318
        %323 = vst [vmem:[#allocation3 + $0x8] sm:$0xf] %v319
        %v324 = vld [vmem:[#allocation2] sm:$0xff]
        %v325 = vld [vmem:[#allocation2 + $0x8] sm:$0xf]
        %s326 = scalar_lea.vmem [#allocation7], 1
        %v327 = vld [vmem:[%s326] ss:$8 sm:$0x3]
        %v329 = vperm.slane %v327, 0
        %v330 = vperm.slane %v327, 1
        %v331 = vrot.slane %v330, 4
        %v332 = vsel %vm312, %v329, %v331
        %333 = vrot.lane.b32.xlu0 %v332, 1
        %v334 = vpop.permute.xlu0 %333
        %v335 = vrot.slane %v334, 4
        %vm336 = vcmask 7168
        %v337 = vsel %vm336, %v335, %v334
        %v340 = vmul.f32 %v324, %v337
        %v341 = vmul.f32 %v325, %v335
        %s344 = scalar_lea.vmem [#allocation1], 1
        %345 = vst [vmem:[%s344] ss:$2 sm:$0xff] %v340
        %s346 = scalar_lea.vmem [#allocation1], 17
        %347 = vst [vmem:[%s346] ss:$2 sm:$0xff] %v341
        %v348 = vld.sshfl [vmem:[#allocation1] sm:$0xff pattern:$0x75316420]
        %v349 = vld.sshfl [vmem:[#allocation1 + $0x8] sm:$0xff pattern:$0x75316420]
        %v350 = vld.sshfl [vmem:[#allocation1 + $0x10] sm:$0xff pattern:$0x75316420]
        %351 = vrot.lane.b32.xlu0 %v348, 127
        %v352 = vpop.permute.xlu0 %351
        %353 = vrot.lane.b32.xlu0 %v349, 127
        %v354 = vpop.permute.xlu0 %353
        %355 = vrot.lane.b32.xlu0 %v350, 127
        %v356 = vpop.permute.xlu0 %355
        %vm357 = vcmask 1039360
        %v358 = vsel %vm357, %v352, %v354
        %v359 = vsel %vm357, %v354, %v356
        %362 = vst [vmem:[#allocation3] sm:$0xf0] %v358
        %363 = vst [vmem:[#allocation3 + $0x8] sm:$0xf0] %v359
        %v364 = vld [vmem:[#allocation2] sm:$0xff]
        %v365 = vld [vmem:[#allocation2 + $0x8] sm:$0xf]
        %s366 = scalar_lea.vmem [#allocation7], 2
        %v367 = vld [vmem:[%s366] ss:$8 sm:$0x3]
        %v369 = vperm.slane %v367, 0
        %v370 = vperm.slane %v367, 1
        %v371 = vrot.slane %v370, 4
        %v372 = vsel %vm312, %v369, %v371
        %373 = vrot.lane.b32.xlu0 %v372, 2
        %v374 = vpop.permute.xlu0 %373
        %v375 = vrot.slane %v374, 4
        %vm376 = vcmask 15360
        %v377 = vsel %vm376, %v375, %v374
        %v380 = vmul.f32 %v364, %v377
        %v381 = vmul.f32 %v365, %v375
        %384 = vst [vmem:[#allocation1] ss:$2 sm:$0xff] %v380
        %s385 = scalar_lea.vmem [#allocation1], 16
        %386 = vst [vmem:[%s385] ss:$2 sm:$0xff] %v381
        %v387 = vld.sshfl [vmem:[#allocation1] sm:$0xff pattern:$0x75316420]
        %v388 = vld.sshfl [vmem:[#allocation1 + $0x8] sm:$0xff pattern:$0x75316420]
        %v389 = vld.sshfl [vmem:[#allocation1 + $0x10] sm:$0xff pattern:$0x75316420]
        %390 = vrot.lane.b32.xlu0 %v387, 126
        %v391 = vpop.permute.xlu0 %390
        %392 = vrot.lane.b32.xlu0 %v388, 126
        %v393 = vpop.permute.xlu0 %392
        %394 = vrot.lane.b32.xlu0 %v389, 126
        %v395 = vpop.permute.xlu0 %394
        %vm396 = vcmask 1031168
        %v397 = vsel %vm396, %v391, %v393
        %v398 = vsel %vm396, %v393, %v395
        %401 = vst [vmem:[#allocation3 + $0x10] sm:$0xf] %v397
        %402 = vst [vmem:[#allocation3 + $0x18] sm:$0xf] %v398
        %v403 = vld [vmem:[#allocation2] sm:$0xff]
        %v404 = vld [vmem:[#allocation2 + $0x8] sm:$0xf]
        %s405 = scalar_lea.vmem [#allocation7], 3
        %v406 = vld [vmem:[%s405] ss:$8 sm:$0x3]
        %v408 = vperm.slane %v406, 0
        %v409 = vperm.slane %v406, 1
        %v410 = vrot.slane %v409, 4
        %v411 = vsel %vm312, %v408, %v410
        %412 = vrot.lane.b32.xlu0 %v411, 16
        %v413 = vpop.permute.xlu0 %412
        %v414 = vrot.slane %v413, 4
        %vm415 = vcmask 130048
        %v416 = vsel %vm415, %v414, %v413
        %v419 = vmul.f32 %v403, %v416
        %v420 = vmul.f32 %v404, %v414
        %s423 = scalar_lea.vmem [#allocation1], 1
        %424 = vst [vmem:[%s423] ss:$2 sm:$0xff] %v419
        %s425 = scalar_lea.vmem [#allocation1], 17
        %426 = vst [vmem:[%s425] ss:$2 sm:$0xff] %v420
        %v427 = vld.sshfl [vmem:[#allocation1] sm:$0xff pattern:$0x75316420]
        %v428 = vld.sshfl [vmem:[#allocation1 + $0x8] sm:$0xff pattern:$0x75316420]
        %v429 = vld.sshfl [vmem:[#allocation1 + $0x10] sm:$0xff pattern:$0x75316420]
        %430 = vrot.lane.b32.xlu0 %v427, 112
        %v431 = vpop.permute.xlu0 %430
        %432 = vrot.lane.b32.xlu0 %v428, 112
        %v433 = vpop.permute.xlu0 %432
        %434 = vrot.lane.b32.xlu0 %v429, 112
        %v435 = vpop.permute.xlu0 %434
        %vm436 = vcmask 916480
        %v437 = vsel %vm436, %v431, %v433
        %v438 = vsel %vm436, %v433, %v435
        %441 = vst [vmem:[#allocation3 + $0x10] sm:$0xf0] %v437
        %442 = vst [vmem:[#allocation3 + $0x18] sm:$0xf0] %v438
        %v443 = vld [vmem:[#allocation2] sm:$0xff]
        %v444 = vld [vmem:[#allocation2 + $0x8] sm:$0xf]
        %447 = vst [vmem:[#allocation1] ss:$2 sm:$0xff] %v443
        %s448 = scalar_lea.vmem [#allocation1], 16
        %449 = vst [vmem:[%s448] ss:$2 sm:$0xff] %v444
        %v450 = vld.sshfl [vmem:[#allocation1] sm:$0xff pattern:$0x75316420]
        %v451 = vld.sshfl [vmem:[#allocation1 + $0x8] sm:$0xff pattern:$0x75316420]
        %v452 = vld.sshfl [vmem:[#allocation1 + $0x10] sm:$0xff pattern:$0x75316420]
        %453 = vrot.lane.b32.xlu0 %v450, 111
        %v454 = vpop.permute.xlu0 %453
        %455 = vrot.lane.b32.xlu0 %v451, 111
        %v456 = vpop.permute.xlu0 %455
        %457 = vrot.lane.b32.xlu0 %v452, 111
        %v458 = vpop.permute.xlu0 %457
        %vm459 = vcmask 908288
        %v460 = vsel %vm459, %v454, %v456
        %v461 = vsel %vm459, %v456, %v458
        %464 = vst [vmem:[#allocation3 + $0x20] sm:$0xf] %v460
        %465 = vst [vmem:[#allocation3 + $0x28] sm:$0xf] %v461
        %v466 = vld [vmem:[#allocation2] sm:$0xff]
        %v467 = vld [vmem:[#allocation2 + $0x8] sm:$0xf]
        %s468 = scalar_lea.vmem [#allocation7], 5
        %v469 = vld [vmem:[%s468] ss:$8 sm:$0x3]
        %v471 = vperm.slane %v469, 0
        %v472 = vperm.slane %v469, 1
        %v473 = vrot.slane %v472, 4
        %v474 = vsel %vm312, %v471, %v473
        %475 = vrot.lane.b32.xlu0 %v474, 18
        %v476 = vpop.permute.xlu0 %475
        %v477 = vrot.slane %v476, 4
        %vm478 = vcmask 146432
        %v479 = vsel %vm478, %v477, %v476
        %v482 = vmul.f32 %v466, %v479
        %v483 = vmul.f32 %v467, %v477
        %s486 = scalar_lea.vmem [#allocation1], 1
        %487 = vst [vmem:[%s486] ss:$2 sm:$0xff] %v482
        %s488 = scalar_lea.vmem [#allocation1], 17
        %489 = vst [vmem:[%s488] ss:$2 sm:$0xff] %v483
        %v490 = vld.sshfl [vmem:[#allocation1] sm:$0xff pattern:$0x75316420]
        %v491 = vld.sshfl [vmem:[#allocation1 + $0x8] sm:$0xff pattern:$0x75316420]
        %v492 = vld.sshfl [vmem:[#allocation1 + $0x10] sm:$0xff pattern:$0x75316420]
        %493 = vrot.lane.b32.xlu0 %v490, 110
        %v494 = vpop.permute.xlu0 %493
        %495 = vrot.lane.b32.xlu0 %v491, 110
        %v496 = vpop.permute.xlu0 %495
        %497 = vrot.lane.b32.xlu0 %v492, 110
        %v498 = vpop.permute.xlu0 %497
        %vm499 = vcmask 900096
        %v500 = vsel %vm499, %v494, %v496
        %v501 = vsel %vm499, %v496, %v498
        %504 = vst [vmem:[#allocation3 + $0x20] sm:$0xf0] %v500
        %505 = vst [vmem:[#allocation3 + $0x28] sm:$0xf0] %v501
        %v506 = vld [vmem:[#allocation2] sm:$0xff]
        %v507 = vld [vmem:[#allocation2 + $0x8] sm:$0xf]
        %s508 = scalar_lea.vmem [#allocation7], 6
        %v509 = vld [vmem:[%s508] ss:$8 sm:$0x3]
        %v511 = vperm.slane %v509, 0
        %v512 = vperm.slane %v509, 1
        %v513 = vrot.slane %v512, 4
        %v514 = vsel %vm312, %v511, %v513
        %515 = vrot.lane.b32.xlu0 %v514, 32
        %v516 = vpop.permute.xlu0 %515
        %v517 = vrot.slane %v516, 4
        %vm518 = vcmask 261120
        %v519 = vsel %vm518, %v517, %v516
        %v522 = vmul.f32 %v506, %v519
        %v523 = vmul.f32 %v507, %v517
        %526 = vst [vmem:[#allocation1] ss:$2 sm:$0xff] %v522
        %s527 = scalar_lea.vmem [#allocation1], 16
        %528 = vst [vmem:[%s527] ss:$2 sm:$0xff] %v523
        %v529 = vld.sshfl [vmem:[#allocation1] sm:$0xff pattern:$0x75316420]
        %v530 = vld.sshfl [vmem:[#allocation1 + $0x8] sm:$0xff pattern:$0x75316420]
        %v531 = vld.sshfl [vmem:[#allocation1 + $0x10] sm:$0xff pattern:$0x75316420]
        %532 = vrot.lane.b32.xlu0 %v529, 96
        %v533 = vpop.permute.xlu0 %532
        %534 = vrot.lane.b32.xlu0 %v530, 96
        %v535 = vpop.permute.xlu0 %534
        %536 = vrot.lane.b32.xlu0 %v531, 96
        %v537 = vpop.permute.xlu0 %536
        %vm538 = vcmask 785408
        %v539 = vsel %vm538, %v533, %v535
        %v540 = vsel %vm538, %v535, %v537
        %543 = vst [vmem:[#allocation3 + $0x30] sm:$0xf] %v539
        %544 = vst [vmem:[#allocation3 + $0x38] sm:$0xf] %v540
        %v545 = vld [vmem:[#allocation2] sm:$0xff]
        %v546 = vld [vmem:[#allocation2 + $0x8] sm:$0xf]
        %s547 = scalar_lea.vmem [#allocation7], 7
        %v548 = vld [vmem:[%s547] ss:$8 sm:$0x3]
        %v550 = vperm.slane %v548, 0
        %v551 = vperm.slane %v548, 1
        %v552 = vrot.slane %v551, 4
        %v553 = vsel %vm312, %v550, %v552
        %554 = vrot.lane.b32.xlu0 %v553, 33
        %v555 = vpop.permute.xlu0 %554
        %v556 = vrot.slane %v555, 4
        %vm557 = vcmask 269312
        %v558 = vsel %vm557, %v556, %v555
        %v561 = vmul.f32 %v545, %v558
        %v562 = vmul.f32 %v546, %v556
        %s565 = scalar_lea.vmem [#allocation1], 1
        %566 = vst [vmem:[%s565] ss:$2 sm:$0xff] %v561
        %s567 = scalar_lea.vmem [#allocation1], 17
        %568 = vst [vmem:[%s567] ss:$2 sm:$0xff] %v562
        %v569 = vld.sshfl [vmem:[#allocation1] sm:$0xff pattern:$0x75316420]
        %v570 = vld.sshfl [vmem:[#allocation1 + $0x8] sm:$0xff pattern:$0x75316420]
        %v571 = vld.sshfl [vmem:[#allocation1 + $0x10] sm:$0xff pattern:$0x75316420]
        %572 = vrot.lane.b32.xlu0 %v569, 95
        %v573 = vpop.permute.xlu0 %572
        %574 = vrot.lane.b32.xlu0 %v570, 95
        %v575 = vpop.permute.xlu0 %574
        %576 = vrot.lane.b32.xlu0 %v571, 95
        %v577 = vpop.permute.xlu0 %576
        %vm578 = vcmask 777216
        %v579 = vsel %vm578, %v573, %v575
        %v580 = vsel %vm578, %v575, %v577
        %583 = vst [vmem:[#allocation3 + $0x30] sm:$0xf0] %v579
        %584 = vst [vmem:[#allocation3 + $0x38] sm:$0xf0] %v580
        %v585 = vld [vmem:[#allocation2] sm:$0xff]
        %v586 = vld [vmem:[#allocation2 + $0x8] sm:$0xf]
        %s587 = scalar_lea.vmem [#allocation7], 16
        %v588 = vld [vmem:[%s587] ss:$8 sm:$0x3]
        %v590 = vperm.slane %v588, 0
        %v591 = vperm.slane %v588, 1
        %v592 = vrot.slane %v591, 4
        %v593 = vsel %vm312, %v590, %v592
        %594 = vrot.lane.b32.xlu0 %v593, 34
        %v595 = vpop.permute.xlu0 %594
        %v596 = vrot.slane %v595, 4
        %vm597 = vcmask 277504
        %v598 = vsel %vm597, %v596, %v595
        %v601 = vmul.f32 %v585, %v598
        %v602 = vmul.f32 %v586, %v596
        %605 = vst [vmem:[#allocation1] ss:$2 sm:$0xff] %v601
        %s606 = scalar_lea.vmem [#allocation1], 16
        %607 = vst [vmem:[%s606] ss:$2 sm:$0xff] %v602
        %v608 = vld.sshfl [vmem:[#allocation1] sm:$0xff pattern:$0x75316420]
        %v609 = vld.sshfl [vmem:[#allocation1 + $0x8] sm:$0xff pattern:$0x75316420]
        %v610 = vld.sshfl [vmem:[#allocation1 + $0x10] sm:$0xff pattern:$0x75316420]
        %611 = vrot.lane.b32.xlu0 %v608, 94
        %v612 = vpop.permute.xlu0 %611
        %613 = vrot.lane.b32.xlu0 %v609, 94
        %v614 = vpop.permute.xlu0 %613
        %615 = vrot.lane.b32.xlu0 %v610, 94
        %v616 = vpop.permute.xlu0 %615
        %vm617 = vcmask 769024
        %v618 = vsel %vm617, %v612, %v614
        %v619 = vsel %vm617, %v614, %v616
        %622 = vst [vmem:[#allocation3 + $0x40] sm:$0xf] %v618
        %623 = vst [vmem:[#allocation3 + $0x48] sm:$0xf] %v619
        %v624 = vld [vmem:[#allocation3] sm:$0xff]
        %v625 = vld [vmem:[#allocation3 + $0x8] sm:$0xff]
        %v626 = vld [vmem:[#allocation3 + $0x10] sm:$0xff]
        %v627 = vld [vmem:[#allocation3 + $0x18] sm:$0xff]
        %v628 = vld [vmem:[#allocation3 + $0x20] sm:$0xff]
        %v629 = vld [vmem:[#allocation3 + $0x28] sm:$0xff]
        %v630 = vld [vmem:[#allocation3 + $0x30] sm:$0xff]
        %v631 = vld [vmem:[#allocation3 + $0x38] sm:$0xff]
        %v632 = vld [vmem:[#allocation3 + $0x40] sm:$0xf]
        %v633 = vld [vmem:[#allocation3 + $0x48] sm:$0xf]
        %v634 = vld [vmem:[%s3] sm:$0xf]
        %636 = vset.pattern.permute.xlu0 0
        %637 = vperm.xlu0 %636, %v634
        %v638 = vpop.permute.xlu0 %637
        %vm640 = vcmask 293888
        %v642 = vsel %vm640, %v292, 0
        %v645 = vsel %vm312, %v632, 0
        %v648 = vsel %vm312, %v633, 0
        %650 = vmatpush.msra.mxu0 0.0
        %651 = vmatpush.msra.mxu0 0.0
        %652 = vmatpush.msra.mxu0 0.0
        %653 = vmatpush.msra.mxu0 0.0
        %654 = vmatpush.msra.mxu0 0.0
        %655 = vmatpush.msra.mxu0 0.0
        %656 = vmatpush.msra.mxu0 0.0
        %657 = vmatpush.msra.mxu0 0.0
        %658 = vmatpush.msra.mxu0 0.0
        %659 = vmatpush.msra.mxu0 0.0
        %660 = vmatpush.msra.mxu0 0.0
        %661 = vmatpush.msra.mxu0 %v645
        %662 = vmatpush.msra.mxu0 %v630
        %663 = vmatpush.msra.mxu0 %v628
        %664 = vmatpush.msra.mxu0 %v626
        %665 = vmatpush.msra.mxu0 %v624
        %666 = vmatmul.f32.gmra.mxu0 %v642
        %v667 = vpop.f32.mrf.mxu0
        %v668 = vadd.f32 %v638, %v667
        %669 = vdwg.mxu0
        %670 = vmatpush.msra.mxu0 0.0
        %671 = vmatpush.msra.mxu0 0.0
        %672 = vmatpush.msra.mxu0 0.0
        %673 = vmatpush.msra.mxu0 0.0
        %674 = vmatpush.msra.mxu0 0.0
        %675 = vmatpush.msra.mxu0 0.0
        %676 = vmatpush.msra.mxu0 0.0
        %677 = vmatpush.msra.mxu0 0.0
        %678 = vmatpush.msra.mxu0 0.0
        %679 = vmatpush.msra.mxu0 0.0
        %680 = vmatpush.msra.mxu0 0.0
        %681 = vmatpush.msra.mxu0 %v648
        %682 = vmatpush.msra.mxu0 %v631
        %683 = vmatpush.msra.mxu0 %v629
        %684 = vmatpush.msra.mxu0 %v627
        %685 = vmatpush.msra.mxu0 %v625
        %686 = vmatmul.f32.gmra.mxu0 %v642
        %v687 = vpop.f32.mrf.mxu0
        %v688 = vadd.f32 %v638, %v687
        %689 = vdwg.mxu0
        %vm690 = vcmp.gt.f32.partialorder %v668, 0.0
        %vm691 = vcmp.gt.f32.partialorder %v688, 0.0
        %v692 = vmul.f32 %v668, 0.01
        %v693 = vmul.f32 %v688, 0.01
        %v694 = vsel %vm690, %v668, %v692
        %v695 = vsel %vm691, %v688, %v693
        %v696 = vld [vmem:[%s4] sm:$0xf]
        %v699 = vrot.slane %v695, 4
        %v700 = vsel %vm312, %v694, %v699
        %701 = vrot.lane.b32.xlu0 %v700, 17
        %v702 = vpop.permute.xlu0 %701
        %v703 = vrot.slane %v702, 4
        %v704 = vsel %vm297, %v703, %v702
        %707 = vst.msk [vmem:[#allocation2] sm:$0xff] %vm303, %v704
        %708 = vst.msk [vmem:[#allocation2 + $0x8] sm:$0xf] %vm287, %v703
        %v709 = vld [vmem:[#allocation2] sm:$0xff]
        %v710 = vld [vmem:[#allocation7] ss:$8 sm:$0x3]
        %v712 = vperm.slane %v710, 0
        %v713 = vperm.slane %v710, 1
        %v714 = vrot.slane %v713, 4
        %v715 = vsel %vm312, %v712, %v714
        %v717 = vmul.f32 %v709, %v715
        %719 = vst [vmem:[#allocation1] ss:$2 sm:$0xff] %v717
        %v720 = vld.sshfl [vmem:[#allocation1] sm:$0xff pattern:$0x75316420]
        %v721 = vld.sshfl [vmem:[#allocation1 + $0x8] sm:$0xff pattern:$0x75316420]
        %724 = vst [vmem:[#allocation3] sm:$0xf] %v720
        %725 = vst [vmem:[#allocation3 + $0x8] sm:$0xf] %v721
        %v726 = vld [vmem:[#allocation2] sm:$0xff]
        %v727 = vld [vmem:[#allocation2 + $0x8] sm:$0xf]
        %v728 = vld [vmem:[%s326] ss:$8 sm:$0x3]
        %v730 = vperm.slane %v728, 0
        %v731 = vperm.slane %v728, 1
        %v732 = vrot.slane %v731, 4
        %v733 = vsel %vm312, %v730, %v732
        %734 = vrot.lane.b32.xlu0 %v733, 1
        %v735 = vpop.permute.xlu0 %734
        %v736 = vrot.slane %v735, 4
        %v737 = vsel %vm336, %v736, %v735
        %v740 = vmul.f32 %v726, %v737
        %v741 = vmul.f32 %v727, %v736
        %s744 = scalar_lea.vmem [#allocation1], 1
        %745 = vst [vmem:[%s744] ss:$2 sm:$0xff] %v740
        %s746 = scalar_lea.vmem [#allocation1], 17
        %747 = vst [vmem:[%s746] ss:$2 sm:$0xff] %v741
        %v748 = vld.sshfl [vmem:[#allocation1] sm:$0xff pattern:$0x75316420]
        %v749 = vld.sshfl [vmem:[#allocation1 + $0x8] sm:$0xff pattern:$0x75316420]
        %v750 = vld.sshfl [vmem:[#allocation1 + $0x10] sm:$0xff pattern:$0x75316420]
        %751 = vrot.lane.b32.xlu0 %v748, 127
        %v752 = vpop.permute.xlu0 %751
        %753 = vrot.lane.b32.xlu0 %v749, 127
        %v754 = vpop.permute.xlu0 %753
        %755 = vrot.lane.b32.xlu0 %v750, 127
        %v756 = vpop.permute.xlu0 %755
        %v757 = vsel %vm357, %v752, %v754
        %v758 = vsel %vm357, %v754, %v756
        %761 = vst [vmem:[#allocation3] sm:$0xf0] %v757
        %762 = vst [vmem:[#allocation3 + $0x8] sm:$0xf0] %v758
        %v763 = vld [vmem:[#allocation2] sm:$0xff]
        %v764 = vld [vmem:[#allocation2 + $0x8] sm:$0xf]
        %v765 = vld [vmem:[%s366] ss:$8 sm:$0x3]
        %v767 = vperm.slane %v765, 0
        %v768 = vperm.slane %v765, 1
        %v769 = vrot.slane %v768, 4
        %v770 = vsel %vm312, %v767, %v769
        %771 = vrot.lane.b32.xlu0 %v770, 2
        %v772 = vpop.permute.xlu0 %771
        %v773 = vrot.slane %v772, 4
        %v774 = vsel %vm376, %v773, %v772
        %v777 = vmul.f32 %v763, %v774
        %v778 = vmul.f32 %v764, %v773
        %781 = vst [vmem:[#allocation1] ss:$2 sm:$0xff] %v777
        %s782 = scalar_lea.vmem [#allocation1], 16
        %783 = vst [vmem:[%s782] ss:$2 sm:$0xff] %v778
        %v784 = vld.sshfl [vmem:[#allocation1] sm:$0xff pattern:$0x75316420]
        %v785 = vld.sshfl [vmem:[#allocation1 + $0x8] sm:$0xff pattern:$0x75316420]
        %v786 = vld.sshfl [vmem:[#allocation1 + $0x10] sm:$0xff pattern:$0x75316420]
        %787 = vrot.lane.b32.xlu0 %v784, 126
        %v788 = vpop.permute.xlu0 %787
        %789 = vrot.lane.b32.xlu0 %v785, 126
        %v790 = vpop.permute.xlu0 %789
        %791 = vrot.lane.b32.xlu0 %v786, 126
        %v792 = vpop.permute.xlu0 %791
        %v793 = vsel %vm396, %v788, %v790
        %v794 = vsel %vm396, %v790, %v792
        %797 = vst [vmem:[#allocation3 + $0x10] sm:$0xf] %v793
        %798 = vst [vmem:[#allocation3 + $0x18] sm:$0xf] %v794
        %v799 = vld [vmem:[#allocation2] sm:$0xff]
        %v800 = vld [vmem:[#allocation2 + $0x8] sm:$0xf]
        %v801 = vld [vmem:[%s405] ss:$8 sm:$0x3]
        %v803 = vperm.slane %v801, 0
        %v804 = vperm.slane %v801, 1
        %v805 = vrot.slane %v804, 4
        %v806 = vsel %vm312, %v803, %v805
        %807 = vrot.lane.b32.xlu0 %v806, 16
        %v808 = vpop.permute.xlu0 %807
        %v809 = vrot.slane %v808, 4
        %v810 = vsel %vm415, %v809, %v808
        %v813 = vmul.f32 %v799, %v810
        %v814 = vmul.f32 %v800, %v809
        %s817 = scalar_lea.vmem [#allocation1], 1
        %818 = vst [vmem:[%s817] ss:$2 sm:$0xff] %v813
        %s819 = scalar_lea.vmem [#allocation1], 17
        %820 = vst [vmem:[%s819] ss:$2 sm:$0xff] %v814
        %v821 = vld.sshfl [vmem:[#allocation1] sm:$0xff pattern:$0x75316420]
        %v822 = vld.sshfl [vmem:[#allocation1 + $0x8] sm:$0xff pattern:$0x75316420]
        %v823 = vld.sshfl [vmem:[#allocation1 + $0x10] sm:$0xff pattern:$0x75316420]
        %824 = vrot.lane.b32.xlu0 %v821, 112
        %v825 = vpop.permute.xlu0 %824
        %826 = vrot.lane.b32.xlu0 %v822, 112
        %v827 = vpop.permute.xlu0 %826
        %828 = vrot.lane.b32.xlu0 %v823, 112
        %v829 = vpop.permute.xlu0 %828
        %v830 = vsel %vm436, %v825, %v827
        %v831 = vsel %vm436, %v827, %v829
        %834 = vst [vmem:[#allocation3 + $0x10] sm:$0xf0] %v830
        %835 = vst [vmem:[#allocation3 + $0x18] sm:$0xf0] %v831
        %v836 = vld [vmem:[#allocation2] sm:$0xff]
        %v837 = vld [vmem:[#allocation2 + $0x8] sm:$0xf]
        %840 = vst [vmem:[#allocation1] ss:$2 sm:$0xff] %v836
        %s841 = scalar_lea.vmem [#allocation1], 16
        %842 = vst [vmem:[%s841] ss:$2 sm:$0xff] %v837
        %v843 = vld.sshfl [vmem:[#allocation1] sm:$0xff pattern:$0x75316420]
        %v844 = vld.sshfl [vmem:[#allocation1 + $0x8] sm:$0xff pattern:$0x75316420]
        %v845 = vld.sshfl [vmem:[#allocation1 + $0x10] sm:$0xff pattern:$0x75316420]
        %846 = vrot.lane.b32.xlu0 %v843, 111
        %v847 = vpop.permute.xlu0 %846
        %848 = vrot.lane.b32.xlu0 %v844, 111
        %v849 = vpop.permute.xlu0 %848
        %850 = vrot.lane.b32.xlu0 %v845, 111
        %v851 = vpop.permute.xlu0 %850
        %v852 = vsel %vm459, %v847, %v849
        %v853 = vsel %vm459, %v849, %v851
        %856 = vst [vmem:[#allocation3 + $0x20] sm:$0xf] %v852
        %857 = vst [vmem:[#allocation3 + $0x28] sm:$0xf] %v853
        %v858 = vld [vmem:[#allocation2] sm:$0xff]
        %v859 = vld [vmem:[#allocation2 + $0x8] sm:$0xf]
        %v860 = vld [vmem:[%s468] ss:$8 sm:$0x3]
        %v862 = vperm.slane %v860, 0
        %v863 = vperm.slane %v860, 1
        %v864 = vrot.slane %v863, 4
        %v865 = vsel %vm312, %v862, %v864
        %866 = vrot.lane.b32.xlu0 %v865, 18
        %v867 = vpop.permute.xlu0 %866
        %v868 = vrot.slane %v867, 4
        %v869 = vsel %vm478, %v868, %v867
        %v872 = vmul.f32 %v858, %v869
        %v873 = vmul.f32 %v859, %v868
        %s876 = scalar_lea.vmem [#allocation1], 1
        %877 = vst [vmem:[%s876] ss:$2 sm:$0xff] %v872
        %s878 = scalar_lea.vmem [#allocation1], 17
        %879 = vst [vmem:[%s878] ss:$2 sm:$0xff] %v873
        %v880 = vld.sshfl [vmem:[#allocation1] sm:$0xff pattern:$0x75316420]
        %v881 = vld.sshfl [vmem:[#allocation1 + $0x8] sm:$0xff pattern:$0x75316420]
        %v882 = vld.sshfl [vmem:[#allocation1 + $0x10] sm:$0xff pattern:$0x75316420]
        %883 = vrot.lane.b32.xlu0 %v880, 110
        %v884 = vpop.permute.xlu0 %883
        %885 = vrot.lane.b32.xlu0 %v881, 110
        %v886 = vpop.permute.xlu0 %885
        %887 = vrot.lane.b32.xlu0 %v882, 110
        %v888 = vpop.permute.xlu0 %887
        %v889 = vsel %vm499, %v884, %v886
        %v890 = vsel %vm499, %v886, %v888
        %893 = vst [vmem:[#allocation3 + $0x20] sm:$0xf0] %v889
        %894 = vst [vmem:[#allocation3 + $0x28] sm:$0xf0] %v890
        %v895 = vld [vmem:[#allocation2] sm:$0xff]
        %v896 = vld [vmem:[#allocation2 + $0x8] sm:$0xf]
        %v897 = vld [vmem:[%s508] ss:$8 sm:$0x3]
        %v899 = vperm.slane %v897, 0
        %v900 = vperm.slane %v897, 1
        %v901 = vrot.slane %v900, 4
        %v902 = vsel %vm312, %v899, %v901
        %903 = vrot.lane.b32.xlu0 %v902, 32
        %v904 = vpop.permute.xlu0 %903
        %v905 = vrot.slane %v904, 4
        %v906 = vsel %vm518, %v905, %v904
        %v909 = vmul.f32 %v895, %v906
        %v910 = vmul.f32 %v896, %v905
        %913 = vst [vmem:[#allocation1] ss:$2 sm:$0xff] %v909
        %s914 = scalar_lea.vmem [#allocation1], 16
        %915 = vst [vmem:[%s914] ss:$2 sm:$0xff] %v910
        %v916 = vld.sshfl [vmem:[#allocation1] sm:$0xff pattern:$0x75316420]
        %v917 = vld.sshfl [vmem:[#allocation1 + $0x8] sm:$0xff pattern:$0x75316420]
        %v918 = vld.sshfl [vmem:[#allocation1 + $0x10] sm:$0xff pattern:$0x75316420]
        %919 = vrot.lane.b32.xlu0 %v916, 96
        %v920 = vpop.permute.xlu0 %919
        %921 = vrot.lane.b32.xlu0 %v917, 96
        %v922 = vpop.permute.xlu0 %921
        %923 = vrot.lane.b32.xlu0 %v918, 96
        %v924 = vpop.permute.xlu0 %923
        %v925 = vsel %vm538, %v920, %v922
        %v926 = vsel %vm538, %v922, %v924
        %929 = vst [vmem:[#allocation3 + $0x30] sm:$0xf] %v925
        %930 = vst [vmem:[#allocation3 + $0x38] sm:$0xf] %v926
        %v931 = vld [vmem:[#allocation2] sm:$0xff]
        %v932 = vld [vmem:[#allocation2 + $0x8] sm:$0xf]
        %v933 = vld [vmem:[%s547] ss:$8 sm:$0x3]
        %v935 = vperm.slane %v933, 0
        %v936 = vperm.slane %v933, 1
        %v937 = vrot.slane %v936, 4
        %v938 = vsel %vm312, %v935, %v937
        %939 = vrot.lane.b32.xlu0 %v938, 33
        %v940 = vpop.permute.xlu0 %939
        %v941 = vrot.slane %v940, 4
        %v942 = vsel %vm557, %v941, %v940
        %v945 = vmul.f32 %v931, %v942
        %v946 = vmul.f32 %v932, %v941
        %s949 = scalar_lea.vmem [#allocation1], 1
        %950 = vst [vmem:[%s949] ss:$2 sm:$0xff] %v945
        %s951 = scalar_lea.vmem [#allocation1], 17
        %952 = vst [vmem:[%s951] ss:$2 sm:$0xff] %v946
        %v953 = vld.sshfl [vmem:[#allocation1] sm:$0xff pattern:$0x75316420]
        %v954 = vld.sshfl [vmem:[#allocation1 + $0x8] sm:$0xff pattern:$0x75316420]
        %v955 = vld.sshfl [vmem:[#allocation1 + $0x10] sm:$0xff pattern:$0x75316420]
        %956 = vrot.lane.b32.xlu0 %v953, 95
        %v957 = vpop.permute.xlu0 %956
        %958 = vrot.lane.b32.xlu0 %v954, 95
        %v959 = vpop.permute.xlu0 %958
        %960 = vrot.lane.b32.xlu0 %v955, 95
        %v961 = vpop.permute.xlu0 %960
        %v962 = vsel %vm578, %v957, %v959
        %v963 = vsel %vm578, %v959, %v961
        %966 = vst [vmem:[#allocation3 + $0x30] sm:$0xf0] %v962
        %967 = vst [vmem:[#allocation3 + $0x38] sm:$0xf0] %v963
        %v968 = vld [vmem:[#allocation2] sm:$0xff]
        %v969 = vld [vmem:[#allocation2 + $0x8] sm:$0xf]
        %v970 = vld [vmem:[%s587] ss:$8 sm:$0x3]
        %v972 = vperm.slane %v970, 0
        %v973 = vperm.slane %v970, 1
        %v974 = vrot.slane %v973, 4
        %v975 = vsel %vm312, %v972, %v974
        %976 = vrot.lane.b32.xlu0 %v975, 34
        %v977 = vpop.permute.xlu0 %976
        %v978 = vrot.slane %v977, 4
        %v979 = vsel %vm597, %v978, %v977
        %v982 = vmul.f32 %v968, %v979
        %v983 = vmul.f32 %v969, %v978
        %986 = vst [vmem:[#allocation1] ss:$2 sm:$0xff] %v982
        %s987 = scalar_lea.vmem [#allocation1], 16
        %988 = vst [vmem:[%s987] ss:$2 sm:$0xff] %v983
        %v989 = vld.sshfl [vmem:[#allocation1] sm:$0xff pattern:$0x75316420]
        %v990 = vld.sshfl [vmem:[#allocation1 + $0x8] sm:$0xff pattern:$0x75316420]
        %v991 = vld.sshfl [vmem:[#allocation1 + $0x10] sm:$0xff pattern:$0x75316420]
        %992 = vrot.lane.b32.xlu0 %v989, 94
        %v993 = vpop.permute.xlu0 %992
        %994 = vrot.lane.b32.xlu0 %v990, 94
        %v995 = vpop.permute.xlu0 %994
        %996 = vrot.lane.b32.xlu0 %v991, 94
        %v997 = vpop.permute.xlu0 %996
        %v998 = vsel %vm617, %v993, %v995
        %v999 = vsel %vm617, %v995, %v997
        %1002 = vst [vmem:[#allocation3 + $0x40] sm:$0xf] %v998
        %1003 = vst [vmem:[#allocation3 + $0x48] sm:$0xf] %v999
        %v1004 = vld [vmem:[#allocation3] sm:$0xff]
        %v1005 = vld [vmem:[#allocation3 + $0x8] sm:$0xff]
        %v1006 = vld [vmem:[#allocation3 + $0x10] sm:$0xff]
        %v1007 = vld [vmem:[#allocation3 + $0x18] sm:$0xff]
        %v1008 = vld [vmem:[#allocation3 + $0x20] sm:$0xff]
        %v1009 = vld [vmem:[#allocation3 + $0x28] sm:$0xff]
        %v1010 = vld [vmem:[#allocation3 + $0x30] sm:$0xff]
        %v1011 = vld [vmem:[#allocation3 + $0x38] sm:$0xff]
        %v1012 = vld [vmem:[#allocation3 + $0x40] sm:$0xf]
        %v1013 = vld [vmem:[#allocation3 + $0x48] sm:$0xf]
        %v1014 = vld [vmem:[%s5] sm:$0xf]
        %1016 = vset.pattern.permute.xlu0 0
        %1017 = vperm.xlu0 %1016, %v1014
        %v1018 = vpop.permute.xlu0 %1017
        %v1021 = vsel %vm640, %v696, 0
        %v1024 = vsel %vm312, %v1012, 0
        %v1027 = vsel %vm312, %v1013, 0
        %1029 = vmatpush.msra.mxu0 0.0
        %1030 = vmatpush.msra.mxu0 0.0
        %1031 = vmatpush.msra.mxu0 0.0
        %1032 = vmatpush.msra.mxu0 0.0
        %1033 = vmatpush.msra.mxu0 0.0
        %1034 = vmatpush.msra.mxu0 0.0
        %1035 = vmatpush.msra.mxu0 0.0
        %1036 = vmatpush.msra.mxu0 0.0
        %1037 = vmatpush.msra.mxu0 0.0
        %1038 = vmatpush.msra.mxu0 0.0
        %1039 = vmatpush.msra.mxu0 0.0
        %1040 = vmatpush.msra.mxu0 %v1024
        %1041 = vmatpush.msra.mxu0 %v1010
        %1042 = vmatpush.msra.mxu0 %v1008
        %1043 = vmatpush.msra.mxu0 %v1006
        %1044 = vmatpush.msra.mxu0 %v1004
        %1045 = vmatmul.f32.gmra.mxu0 %v1021
        %v1046 = vpop.f32.mrf.mxu0
        %v1047 = vadd.f32 %v1018, %v1046
        %1048 = vdwg.mxu0
        %1049 = vmatpush.msra.mxu0 0.0
        %1050 = vmatpush.msra.mxu0 0.0
        %1051 = vmatpush.msra.mxu0 0.0
        %1052 = vmatpush.msra.mxu0 0.0
        %1053 = vmatpush.msra.mxu0 0.0
        %1054 = vmatpush.msra.mxu0 0.0
        %1055 = vmatpush.msra.mxu0 0.0
        %1056 = vmatpush.msra.mxu0 0.0
        %1057 = vmatpush.msra.mxu0 0.0
        %1058 = vmatpush.msra.mxu0 0.0
        %1059 = vmatpush.msra.mxu0 0.0
        %1060 = vmatpush.msra.mxu0 %v1027
        %1061 = vmatpush.msra.mxu0 %v1011
        %1062 = vmatpush.msra.mxu0 %v1009
        %1063 = vmatpush.msra.mxu0 %v1007
        %1064 = vmatpush.msra.mxu0 %v1005
        %1065 = vmatmul.f32.gmra.mxu0 %v1021
        %v1066 = vpop.f32.mrf.mxu0
        %v1067 = vadd.f32 %v1018, %v1066
        %1068 = vdwg.mxu0
        %v1071 = vrot.slane %v1067, 4
        %v1072 = vsel %vm312, %v1047, %v1071
        %v1074 = vadd.f32 %v291, %v1072
        %1075 = vst [vmem:[%s286] sm:$0xff] %v1074
        %s1076 = sand.u32 %s163, 1
        %s1077 = scalar_lea.sflag [#allocation6], %s1076
        %s1078 = sand.u32 %s163, 1
        %s1079 = smul.addr %s1078, 8
        %s1080 = scalar_lea.vmem [#allocation9], %s1079
        // Predicated region
        $region53: #{tpu_custom_call.1} parent=43 // pred_check
          %p1081 = pneg %p173
        $region54: #{tpu_custom_call.1} parent=43 // pred_check_branch
          %1083 = sbr.rel (%p1081) target = $region56
        $region55: #{tpu_custom_call.1} parent=43 // pred_region
          %1085 = vsyncadd %s1077, 0
          %s1086 = smul.addr %s24, 2
          %s1087 = smul.addr %s1086, 4
          %s1088 = scalar_lea.hbm %s6, %s1087
          %s1090 = sshll.u32 %s1080, 4
          %s1091 = int_to_ptr.vmem [resolvable:$true] %s1090
          %s1092 = sshll.u32 %s1088, 4
          %s1093 = int_to_ptr.hbm [resolvable:$true] %s1092
          %1095 = dma.vmem_to_hbm [thread:$0]  %s1091, 128, %s1093, %s1077
        $region56: #{tpu_custom_call.1} parent=43 // pred_fallthru
          _
      $region44: #{tpu_custom_call.1} parent=5 // pred_fallthru
        _
      %p1096 = scmp.le.s32.totalorder 2, %s19
      // Predicated region
      $region57: #{tpu_custom_call.1} parent=5 // pred_check
        %p1097 = pneg %p1096
      $region58: #{tpu_custom_call.1} parent=5 // pred_check_branch
        %1099 = sbr.rel (%p1097) target = $region60
      $region59: #{tpu_custom_call.1} parent=5 // pred_region
        %s1100 = ssub.s32 %s19, 2
        // Predicated region
        $region61: #{tpu_custom_call.1} parent=59 // pred_check
          %p1101 = pneg %p179
        $region62: #{tpu_custom_call.1} parent=59 // pred_check_branch
          %1103 = sbr.rel (%p1101) target = $region64
        $region63: #{tpu_custom_call.1} parent=59 // pred_region
          %s1104 = sand.u32 %s164, 1
          %s1105 = scalar_lea.sflag [#allocation6], %s1104
          %s1106 = sand.u32 %s164, 1
          %s1107 = smul.addr %s1106, 8
          %s1108 = scalar_lea.vmem [#allocation9], %s1107
          %1110 = dma.done %s1105, 128
        $region64: #{tpu_custom_call.1} parent=59 // pred_fallthru
          _
      $region60: #{tpu_custom_call.1} parent=5 // pred_fallthru
        _
    $region6: #{tpu_custom_call.1} parent=1 // loop_footer
      %s23 = sadd.s32 1, %s19
    $region7: #{tpu_custom_call.1} parent=1 // loop_footer_branch
      %18 = sbr.rel target = $region3
    $region8: #{tpu_custom_call.1} parent=1 // loop_exit
      _
    %1111 = vsyncpa [#allocation5], 1
    %s1112 = scalar_lea.sflag [#allocation5], 1
    %1113 = vsyncpa %s1112, 1
    %1114 = vsyncpa [#allocation8], 1
    %1115 = vsyncpa [#allocation6], 1
    %s1116 = scalar_lea.sflag [#allocation6], 1
    %1117 = vsyncpa %s1116, 1

</llo_original>
